<compile_context>
chip_gen: v7x
topology: tpu7x:2x2x1
jax: 0.10.0
libtpu: 0.0.40
codegen_flags: <defaults>
</compile_context>

<pallas_src>
import jax
import jax.numpy as jnp
from jax.experimental import pallas as pl
from jax.experimental.pallas import tpu as pltpu


# ----------------------------------------------------------------------------
# Fused kernel: out = HG_pu @ (HG_up @ embs), everything resident in VMEM.
# ----------------------------------------------------------------------------
def _fused_hyperconv_kernel(up_ref, pu_ref, e_ref, o_ref):
    # Hop 1: (U, P) @ (P, Dp) -> (U, Dp), f32 accumulation on the MXU.
    msg = jnp.dot(up_ref[...], e_ref[...], preferred_element_type=jnp.float32)
    # Hop 2: (P, U) @ (U, Dp) -> (P, Dp); msg re-enters the MXU as bf16.
    o_ref[...] = jnp.dot(
        pu_ref[...], msg.astype(jnp.bfloat16),
        preferred_element_type=jnp.float32,
    ).astype(o_ref.dtype)


def _fused_hyperconv(HG_up, HG_pu, embs_p):
    U, P = HG_up.shape
    Dp = embs_p.shape[1]

    up = HG_up.astype(jnp.bfloat16)
    pu = HG_pu.astype(jnp.bfloat16)
    em = embs_p.astype(jnp.bfloat16)

    cost = pl.CostEstimate(
        flops=2 * U * P * Dp + 2 * P * U * Dp,
        transcendentals=0,
        bytes_accessed=2 * (U * P + P * U + P * Dp) + 4 * P * Dp,
    )

    return pl.pallas_call(
        _fused_hyperconv_kernel,
        out_shape=jax.ShapeDtypeStruct((P, Dp), jnp.float32),
        grid=(1,),
        in_specs=[
            pl.BlockSpec((U, P), lambda i: (0, 0)),
            pl.BlockSpec((P, U), lambda i: (0, 0)),
            pl.BlockSpec((P, Dp), lambda i: (0, 0)),
        ],
        out_specs=pl.BlockSpec((P, Dp), lambda i: (0, 0)),
        compiler_params=pltpu.CompilerParams(
            dimension_semantics=("arbitrary",),
            vmem_limit_bytes=32 * 1024 * 1024,
        ),
        cost_estimate=cost,
    )(up, pu, em)


# ----------------------------------------------------------------------------
# Generic tiled matmul kernel (fallback for large shapes):
# C = A @ B, bf16 operands, f32 accumulation.
# ----------------------------------------------------------------------------
def _matmul_kernel(a_ref, b_ref, o_ref, acc_ref):
    @pl.when(pl.program_id(2) == 0)
    def _():
        acc_ref[...] = jnp.zeros_like(acc_ref)

    acc_ref[...] += jnp.dot(a_ref[...], b_ref[...],
                            preferred_element_type=jnp.float32)

    @pl.when(pl.program_id(2) == pl.num_programs(2) - 1)
    def _():
        o_ref[...] = acc_ref[...].astype(o_ref.dtype)


def _pick_tile(dim, cap, multiple):
    """Largest tile <= cap that is a multiple of `multiple` and divides dim."""
    if dim <= cap:
        return dim
    t = (cap // multiple) * multiple
    while t >= multiple:
        if dim % t == 0:
            return t
        t -= multiple
    return dim


def _tiled_matmul(a, b, out_dtype):
    """C = A @ B on the MXU with bf16 inputs and a float32 VMEM accumulator."""
    M, K = a.shape
    K2, N = b.shape
    assert K == K2, (a.shape, b.shape)

    a = a.astype(jnp.bfloat16)
    b = b.astype(jnp.bfloat16)

    # Tile caps keep 2x double-buffered inputs + acc far below the 32 MiB
    # scoped-VMEM default on v7x (fine on v5e/v6e as well).
    tm = _pick_tile(M, 256, 8)     # sublane dim of A / out
    tn = _pick_tile(N, 256, 128)   # lane dim of B / out
    tk = _pick_tile(K, 512, 128)   # reduction dim (lane of A, sublane of B)
    grid = (M // tm, N // tn, K // tk)

    cost = pl.CostEstimate(
        flops=2 * M * N * K,
        transcendentals=0,
        bytes_accessed=(M * K + K * N) * 2 + M * N * jnp.dtype(out_dtype).itemsize,
    )

    return pl.pallas_call(
        _matmul_kernel,
        out_shape=jax.ShapeDtypeStruct((M, N), out_dtype),
        grid=grid,
        in_specs=[
            pl.BlockSpec((tm, tk), lambda i, j, k: (i, k)),
            pl.BlockSpec((tk, tn), lambda i, j, k: (k, j)),
        ],
        out_specs=pl.BlockSpec((tm, tn), lambda i, j, k: (i, j)),
        scratch_shapes=[pltpu.VMEM((tm, tn), jnp.float32)],
        compiler_params=pltpu.CompilerParams(
            dimension_semantics=("parallel", "parallel", "arbitrary"),
            vmem_limit_bytes=32 * 1024 * 1024,
        ),
        cost_estimate=cost,
    )(a, b)


# ----------------------------------------------------------------------------
# MultiViewHyperConvLayer.forward
# ----------------------------------------------------------------------------
# Everything (double-buffered bf16 inputs + f32 output + msg) must stay well
# inside the 32 MiB scoped-VMEM default for the fused path to be legal.
_FUSED_VMEM_BUDGET_BYTES = 20 * 1024 * 1024


def multi_view_hyper_conv(pois_embs, pad_all_train_sessions, HG_up, HG_pu):
    """propag_pois_embs = HG_pu @ (HG_up @ pois_embs)."""
    del pad_all_train_sessions  # accepted but unused by the PyTorch forward
    num_users, num_pois = HG_up.shape
    emb_dim = pois_embs.shape[1]
    assert HG_pu.shape == (num_pois, num_users)
    assert pois_embs.shape == (num_pois, emb_dim)

    # Lane-densify the embedding dim: pad D up to a multiple of 128 so MXU
    # result columns and output stores are fully utilised.  Padded columns are
    # exactly zero through both hops and are sliced off at the end.
    d_padded = ((emb_dim + 127) // 128) * 128
    if d_padded != emb_dim:
        embs_p = jnp.pad(pois_embs, ((0, 0), (0, d_padded - emb_dim)))
    else:
        embs_p = pois_embs

    # VMEM footprint estimate for the fused path (2x for double-buffering of
    # the pipelined blocks, f32 msg + output).
    fused_bytes = (
        2 * 2 * (num_users * num_pois + num_pois * num_users + num_pois * d_padded)
        + 4 * num_users * d_padded
        + 2 * 4 * num_pois * d_padded
    )

    if fused_bytes <= _FUSED_VMEM_BUDGET_BYTES:
        # Single fused kernel: no HBM round trip for msg, one launch.
        out_p = _fused_hyperconv(HG_up, HG_pu, embs_p)               # (P, Dp)
    else:
        # Hop 1: aggregate POI messages onto user/session hyperedges.  msg is
        # kept in bf16 so hop 2 reads it straight into the MXU.
        msg = _tiled_matmul(HG_up, embs_p, out_dtype=jnp.bfloat16)   # (U, Dp)
        # Hop 2: propagate back to POIs; msg is computed once and re-used
        # across every P output tile.
        out_p = _tiled_matmul(HG_pu, msg, out_dtype=jnp.float32)     # (P, Dp)

    return out_p[:, :emb_dim]


def reference(pois_embs, HG_up, HG_pu):
    """Pure-JAX reference emulating the kernel's bf16-input / f32-acc path."""
    f32 = jnp.float32
    up = HG_up.astype(jnp.bfloat16).astype(f32)
    pu = HG_pu.astype(jnp.bfloat16).astype(f32)
    pe = pois_embs.astype(jnp.bfloat16).astype(f32)
    msg = (up @ pe).astype(jnp.bfloat16).astype(f32)
    return pu @ msg


if __name__ == "__main__":
    key = jax.random.PRNGKey(0)
    k_emb, k_up, k_pu, k_mask_up, k_mask_pu, k_fc_w = jax.random.split(key, 6)

    num_pois = 128   # P
    num_users = 64   # U (hyperedges / sessions)
    emb_dim = 32     # D

    # POI embeddings.
    pois_embs = jax.random.normal(k_emb, (num_pois, emb_dim), dtype=jnp.float32)

    # Sparse-ish incidence matrices, materialized densely (~10% nonzero) — same
    # math as torch.sparse.mm on the dense equivalent.
    HG_up = (jax.random.uniform(k_up, (num_users, num_pois)) *
             (jax.random.uniform(k_mask_up, (num_users, num_pois)) < 0.1)
             ).astype(jnp.float32)
    HG_pu = (jax.random.uniform(k_pu, (num_pois, num_users)) *
             (jax.random.uniform(k_mask_pu, (num_pois, num_users)) < 0.1)
             ).astype(jnp.float32)

    # TODO(synk): fc_fusion (Linear 2D->D) and Dropout(0.3) exist in __init__
    # but are never invoked in the module's forward; parameters are initialised
    # here only for shape fidelity and are not lowered to Pallas.
    fc_fusion_w = jax.random.normal(k_fc_w, (emb_dim, 2 * emb_dim), jnp.float32) * 0.02
    fc_fusion_b = jnp.zeros((emb_dim,), jnp.float32)

    # pad_all_train_sessions is accepted but unused by the PyTorch forward.
    pad_all_train_sessions = jnp.zeros((num_users, 8), jnp.int32)

    out = multi_view_hyper_conv(pois_embs, pad_all_train_sessions, HG_up, HG_pu)
    out = jax.block_until_ready(out)

    ref = reference(pois_embs, HG_up, HG_pu)
    assert out.shape == (num_pois, emb_dim)
    assert jnp.allclose(out, ref, atol=2e-2, rtol=2e-2), "mismatch vs reference"

    print("KERNEL_OK")
</pallas_src>

<mosaic_0001>
module attributes {stable_mosaic.version = 11 : i64} {
  func.func @_fused_hyperconv_kernel(%arg0: i32, %arg1: memref<64x128xbf16, #tpu.memory_space<vmem>>, %arg2: memref<128x64xbf16, #tpu.memory_space<vmem>>, %arg3: memref<128x128xbf16, #tpu.memory_space<vmem>>, %arg4: memref<128x128xf32, #tpu.memory_space<vmem>>) attributes {dimension_semantics = [#tpu.dimension_semantics<arbitrary>], iteration_bounds = array<i64: 1>, scalar_prefetch = 0 : i64, scratch_operands = 0 : i64, tpu.core_type = #tpu.core_type<tc>, window_params = [{pipeline_mode = #tpu.pipeline_mode<synchronous>, transform_indices = @transform_0, window_bounds = array<i64: 64, 128>}, {pipeline_mode = #tpu.pipeline_mode<synchronous>, transform_indices = @transform_1, window_bounds = array<i64: 128, 64>}, {pipeline_mode = #tpu.pipeline_mode<synchronous>, transform_indices = @transform_2, window_bounds = array<i64: 128, 128>}, {pipeline_mode = #tpu.pipeline_mode<synchronous>, transform_indices = @transform_3, window_bounds = array<i64: 128, 128>}]} {
    %c0 = arith.constant 0 : index
    %c0_0 = arith.constant 0 : index
    %0 = vector.load %arg1[%c0, %c0_0] : memref<64x128xbf16, #tpu.memory_space<vmem>>, vector<64x128xbf16>
    %c0_1 = arith.constant 0 : index
    %c0_2 = arith.constant 0 : index
    %1 = vector.load %arg3[%c0_1, %c0_2] : memref<128x128xbf16, #tpu.memory_space<vmem>>, vector<128x128xbf16>
    %cst = arith.constant dense<0.000000e+00> : vector<64x128xf32>
    %2 = tpu.matmul %0, %1, %cst {dimension_numbers = #tpu.dot_dimension_numbers<[1], [0], [0], [1], [0, 0, 1, 1], [], []>} : vector<64x128xbf16>, vector<128x128xbf16>, vector<64x128xf32> -> vector<64x128xf32>
    %c0_3 = arith.constant 0 : index
    %c0_4 = arith.constant 0 : index
    %3 = vector.load %arg2[%c0_3, %c0_4] : memref<128x64xbf16, #tpu.memory_space<vmem>>, vector<128x64xbf16>
    %4 = arith.truncf %2 : vector<64x128xf32> to vector<64x128xbf16>
    %cst_5 = arith.constant dense<0.000000e+00> : vector<128x128xf32>
    %5 = tpu.matmul %3, %4, %cst_5 {dimension_numbers = #tpu.dot_dimension_numbers<[1], [0], [0], [1], [0, 0, 1, 1], [], []>} : vector<128x64xbf16>, vector<64x128xbf16>, vector<128x128xf32> -> vector<128x128xf32>
    %c0_6 = arith.constant 0 : index
    %c0_7 = arith.constant 0 : index
    %6 = vector.load %arg4[%c0_6, %c0_7] : memref<128x128xf32, #tpu.memory_space<vmem>>, vector<128x128xf32>
    tpu.vector_store %arg4[%c0_6, %c0_7], %5 {strides = array<i32>} : memref<128x128xf32, #tpu.memory_space<vmem>>, vector<128x128xf32>,
    return
  }
  func.func @transform_0(%arg0: i32) -> (i32, i32) {
    %c0_i32 = arith.constant 0 : i32
    %c0_i32_0 = arith.constant 0 : i32
    %c0_i32_1 = arith.constant 0 : i32
    return %c0_i32, %c0_i32_0 : i32, i32
  }
  func.func @transform_1(%arg0: i32) -> (i32, i32) {
    %c0_i32 = arith.constant 0 : i32
    %c0_i32_0 = arith.constant 0 : i32
    %c0_i32_1 = arith.constant 0 : i32
    return %c0_i32, %c0_i32_0 : i32, i32
  }
  func.func @transform_2(%arg0: i32) -> (i32, i32) {
    %c0_i32 = arith.constant 0 : i32
    %c0_i32_0 = arith.constant 0 : i32
    %c0_i32_1 = arith.constant 0 : i32
    return %c0_i32, %c0_i32_0 : i32, i32
  }
  func.func @transform_3(%arg0: i32) -> (i32, i32) {
    %c0_i32 = arith.constant 0 : i32
    %c0_i32_0 = arith.constant 0 : i32
    %c0_i32_1 = arith.constant 0 : i32
    return %c0_i32, %c0_i32_0 : i32, i32
  }
}

</mosaic_0001>

<llo_original>
// kernel: tpu_custom_call.1
$region0: #{tpu_custom_call.1}
  #allocation0 [shape = 'u32[]', space=smem, size = 0x4, offset = 0x4, fixed_abs, tag = 'smem constant byte address 0x4 - core index']
  #allocation1 [shape = 'u32[144,128]{1,0:T(1,128)}', space=vmem, size = 0x12000, scoped, tag = 'internal scratch']
  %s0 = inlined_call_operand.vmem [shape: bf16[64,128], index: 0, kind: input, shape index: {}]
  %s1 = inlined_call_operand.vmem [shape: bf16[128,64], index: 1, kind: input, shape index: {}]
  %s2 = inlined_call_operand.vmem [shape: bf16[128,128], index: 2, kind: input, shape index: {}]
  %s3 = inlined_call_operand.hbm [shape: f32[128,128], index: 3, kind: output, shape index: {}]
  %s4 = sld [smem:[#allocation0]]
  $region22: #{tpu_custom_call.1} parent=0
    _
  %s6 = ssub.s32 1, %s4
  %s7 = scalar_select 0, %s6, %s4
  $region1: #{tpu_custom_call.1} parent=0
    #allocation2 [shape = 'u8[65536]{0}', space=vmem, size = 0x10000, scoped, tag = 'output window, operand 0, single buffered']
    #allocation3 [shape = 's32[1]{0}', space=sflag, size = 0x4, scoped, tag = 'scoped memory for tpu_custom_call.1']
    %8 = vsyncpa [#allocation3], 0
    // Predicated region
    $region2: #{tpu_custom_call.1} parent=1 // pred_check
      _
    $region3: #{tpu_custom_call.1} parent=1 // pred_check_branch
      %10 = sbr.rel (0) target = $region5
    $region4: #{tpu_custom_call.1} parent=1 // pred_region
      _
    $region5: #{tpu_custom_call.1} parent=1 // pred_fallthru
      _
    // Predicated region
    $region6: #{tpu_custom_call.1} parent=1 // pred_check
      _
    $region7: #{tpu_custom_call.1} parent=1 // pred_check_branch
      %12 = sbr.rel (0) target = $region9
    $region8: #{tpu_custom_call.1} parent=1 // pred_region
      _
    $region9: #{tpu_custom_call.1} parent=1 // pred_fallthru
      _
    // Predicated region
    $region10: #{tpu_custom_call.1} parent=1 // pred_check
      _
    $region11: #{tpu_custom_call.1} parent=1 // pred_check_branch
      %14 = sbr.rel (0) target = $region13
    $region12: #{tpu_custom_call.1} parent=1 // pred_region
      _
    $region13: #{tpu_custom_call.1} parent=1 // pred_fallthru
      _
    %v16 = vld [vmem:[%s0] sm:$0xf]
    %v17 = vld [vmem:[%s0 + $0x4] sm:$0xf]
    %v18 = vld [vmem:[%s0 + $0x8] sm:$0xf]
    %v19 = vld [vmem:[%s0 + $0xc] sm:$0xf]
    %v20 = vld [vmem:[%s0 + $0x10] sm:$0xf]
    %v21 = vld [vmem:[%s0 + $0x14] sm:$0xf]
    %v22 = vld [vmem:[%s0 + $0x18] sm:$0xf]
    %v23 = vld [vmem:[%s0 + $0x1c] sm:$0xf]
    %v24 = vld [vmem:[%s2] sm:$0xf]
    %v25 = vld [vmem:[%s2 + $0x4] sm:$0xf]
    %v26 = vld [vmem:[%s2 + $0x8] sm:$0xf]
    %v27 = vld [vmem:[%s2 + $0xc] sm:$0xf]
    %v28 = vld [vmem:[%s2 + $0x10] sm:$0xf]
    %v29 = vld [vmem:[%s2 + $0x14] sm:$0xf]
    %v30 = vld [vmem:[%s2 + $0x18] sm:$0xf]
    %v31 = vld [vmem:[%s2 + $0x1c] sm:$0xf]
    %v32 = vld [vmem:[%s2 + $0x20] sm:$0xf]
    %v33 = vld [vmem:[%s2 + $0x24] sm:$0xf]
    %v34 = vld [vmem:[%s2 + $0x28] sm:$0xf]
    %v35 = vld [vmem:[%s2 + $0x2c] sm:$0xf]
    %v36 = vld [vmem:[%s2 + $0x30] sm:$0xf]
    %v37 = vld [vmem:[%s2 + $0x34] sm:$0xf]
    %v38 = vld [vmem:[%s2 + $0x38] sm:$0xf]
    %v39 = vld [vmem:[%s2 + $0x3c] sm:$0xf]
    %v48 = vunpack.c.l.b16 %v16
    %v49 = vunpack.c.l.b16 %v17
    %v50 = vunpack.c.l.b16 %v18
    %v51 = vunpack.c.l.b16 %v19
    %v52 = vunpack.c.l.b16 %v20
    %v53 = vunpack.c.l.b16 %v21
    %v54 = vunpack.c.l.b16 %v22
    %v55 = vunpack.c.l.b16 %v23
    %v56 = vpack.c.b16 %v49, %v48
    %v57 = vpack.c.b16 %v51, %v50
    %v58 = vpack.c.b16 %v53, %v52
    %v59 = vpack.c.b16 %v55, %v54
    %v80 = vunpack.c.l.b16 %v24
    %v81 = vunpack.c.l.b16 %v25
    %v82 = vunpack.c.l.b16 %v26
    %v83 = vunpack.c.l.b16 %v27
    %v84 = vunpack.c.l.b16 %v28
    %v85 = vunpack.c.l.b16 %v29
    %v86 = vunpack.c.l.b16 %v30
    %v87 = vunpack.c.l.b16 %v31
    %v88 = vunpack.c.l.b16 %v32
    %v89 = vunpack.c.l.b16 %v33
    %v90 = vunpack.c.l.b16 %v34
    %v91 = vunpack.c.l.b16 %v35
    %v92 = vunpack.c.l.b16 %v36
    %v93 = vunpack.c.l.b16 %v37
    %v94 = vunpack.c.l.b16 %v38
    %v95 = vunpack.c.l.b16 %v39
    %v96 = vpack.c.b16 %v81, %v80
    %v97 = vpack.c.b16 %v83, %v82
    %v98 = vpack.c.b16 %v85, %v84
    %v99 = vpack.c.b16 %v87, %v86
    %v100 = vpack.c.b16 %v89, %v88
    %v101 = vpack.c.b16 %v91, %v90
    %v102 = vpack.c.b16 %v93, %v92
    %v103 = vpack.c.b16 %v95, %v94
    %112 = vmatprep.subr.bf16.mxu0 0
    %113 = vmatpush1.bf16.msra.mxu0 %v96
    %114 = vmatprep.subr.bf16.mxu0 0
    %115 = vmatpush1.bf16.msra.mxu0 %v97
    %116 = vmatprep.subr.bf16.mxu0 0
    %117 = vmatpush1.bf16.msra.mxu0 %v98
    %118 = vmatprep.subr.bf16.mxu0 0
    %119 = vmatpush1.bf16.msra.mxu0 %v99
    %120 = vmatprep.subr.bf16.mxu0 0
    %121 = vmatpush1.bf16.msra.mxu0 %v100
    %122 = vmatprep.subr.bf16.mxu0 0
    %123 = vmatpush1.bf16.msra.mxu0 %v101
    %124 = vmatprep.subr.bf16.mxu0 0
    %125 = vmatpush1.bf16.msra.mxu0 %v102
    %126 = vmatprep.subr.bf16.mxu0 0
    %127 = vmatpush1.bf16.msra.mxu0 %v103
    %128 = vmatprep.subr.bf16.mxu0 0
    %129 = vmatpush1.bf16.msra.mxu0 0
    %130 = vmatprep.subr.bf16.mxu0 0
    %131 = vmatpush1.bf16.msra.mxu0 0
    %132 = vmatprep.subr.bf16.mxu0 0
    %133 = vmatpush1.bf16.msra.mxu0 0
    %134 = vmatprep.subr.bf16.mxu0 0
    %135 = vmatpush1.bf16.msra.mxu0 0
    %136 = vmatprep.subr.bf16.mxu0 0
    %137 = vmatpush1.bf16.msra.mxu0 0
    %138 = vmatprep.subr.bf16.mxu0 0
    %139 = vmatpush1.bf16.msra.mxu0 0
    %140 = vmatprep.subr.bf16.mxu0 0
    %141 = vmatpush1.bf16.msra.mxu0 0
    %142 = vmatprep.subr.bf16.mxu0 0
    %143 = vmatpush1.bf16.msra.mxu0 0
    %144 = vmatprep.mubr.bf16.mxu0 0
    %145 = vmatmul.mubr.bf16.gmra.mrb[0].mxu0 %v56
    %v146 = vpop.f32.mrb[0].mxu0
    %v147 = vadd.f32 0.0, %v146
    %v148 = vpop.f32.mrb[0].mxu0
    %v149 = vpop.f32.mrb[0].mxu0
    %v150 = vadd.f32 0.0, %v149
    %v151 = vpop.f32.mrb[0].mxu0
    %152 = vmatprep.mubr.bf16.mxu0 0
    %153 = vmatmul.mubr.bf16.gmra.mrb[0].mxu0 %v57
    %v154 = vpop.f32.mrb[0].mxu0
    %v155 = vadd.f32 0.0, %v154
    %v156 = vpop.f32.mrb[0].mxu0
    %v157 = vpop.f32.mrb[0].mxu0
    %v158 = vadd.f32 0.0, %v157
    %v159 = vpop.f32.mrb[0].mxu0
    %160 = vmatprep.mubr.bf16.mxu0 0
    %161 = vmatmul.mubr.bf16.gmra.mrb[0].mxu0 %v58
    %v162 = vpop.f32.mrb[0].mxu0
    %v163 = vadd.f32 0.0, %v162
    %v164 = vpop.f32.mrb[0].mxu0
    %v165 = vpop.f32.mrb[0].mxu0
    %v166 = vadd.f32 0.0, %v165
    %v167 = vpop.f32.mrb[0].mxu0
    %168 = vmatprep.mubr.bf16.mxu0 0
    %169 = vmatmul.mubr.bf16.gmra.mrb[0].mxu0 %v59
    %v170 = vpop.f32.mrb[0].mxu0
    %v171 = vadd.f32 0.0, %v170
    %v172 = vpop.f32.mrb[0].mxu0
    %v173 = vpop.f32.mrb[0].mxu0
    %v174 = vadd.f32 0.0, %v173
    %v175 = vpop.f32.mrb[0].mxu0
    %176 = vdwg.mxu0
    %v177 = vld [vmem:[%s1] sm:$0xf]
    %v178 = vld [vmem:[%s1 + $0x4] sm:$0xf]
    %v179 = vld [vmem:[%s1 + $0x8] sm:$0xf]
    %v180 = vld [vmem:[%s1 + $0xc] sm:$0xf]
    %v181 = vld [vmem:[%s1 + $0x10] sm:$0xf]
    %v182 = vld [vmem:[%s1 + $0x14] sm:$0xf]
    %v183 = vld [vmem:[%s1 + $0x18] sm:$0xf]
    %v184 = vld [vmem:[%s1 + $0x1c] sm:$0xf]
    %v185 = vld [vmem:[%s1 + $0x20] sm:$0xf]
    %v186 = vld [vmem:[%s1 + $0x24] sm:$0xf]
    %v187 = vld [vmem:[%s1 + $0x28] sm:$0xf]
    %v188 = vld [vmem:[%s1 + $0x2c] sm:$0xf]
    %v189 = vld [vmem:[%s1 + $0x30] sm:$0xf]
    %v190 = vld [vmem:[%s1 + $0x34] sm:$0xf]
    %v191 = vld [vmem:[%s1 + $0x38] sm:$0xf]
    %v192 = vld [vmem:[%s1 + $0x3c] sm:$0xf]
    %v193 = vpack.c.bf16 %v150, %v147
    %v194 = vpack.c.bf16 %v158, %v155
    %v195 = vpack.c.bf16 %v166, %v163
    %v196 = vpack.c.bf16 %v174, %v171
    %v213 = vunpack.c.l.b16 %v177
    %v214 = vunpack.c.l.b16 %v178
    %v215 = vunpack.c.l.b16 %v179
    %v216 = vunpack.c.l.b16 %v180
    %v217 = vunpack.c.l.b16 %v181
    %v218 = vunpack.c.l.b16 %v182
    %v219 = vunpack.c.l.b16 %v183
    %v220 = vunpack.c.l.b16 %v184
    %v221 = vunpack.c.l.b16 %v185
    %v222 = vunpack.c.l.b16 %v186
    %v223 = vunpack.c.l.b16 %v187
    %v224 = vunpack.c.l.b16 %v188
    %v225 = vunpack.c.l.b16 %v189
    %v226 = vunpack.c.l.b16 %v190
    %v227 = vunpack.c.l.b16 %v191
    %v228 = vunpack.c.l.b16 %v192
    %v229 = vpack.c.b16 %v214, %v213
    %v230 = vpack.c.b16 %v216, %v215
    %v231 = vpack.c.b16 %v218, %v217
    %v232 = vpack.c.b16 %v220, %v219
    %v233 = vpack.c.b16 %v222, %v221
    %v234 = vpack.c.b16 %v224, %v223
    %v235 = vpack.c.b16 %v226, %v225
    %v236 = vpack.c.b16 %v228, %v227
    %vm237 = vcmask 523264
    %v239 = vsel %vm237, %v229, 0
    %v242 = vsel %vm237, %v230, 0
    %v245 = vsel %vm237, %v231, 0
    %v248 = vsel %vm237, %v232, 0
    %v251 = vsel %vm237, %v233, 0
    %v254 = vsel %vm237, %v234, 0
    %v257 = vsel %vm237, %v235, 0
    %v260 = vsel %vm237, %v236, 0
    %262 = vmatprep.subr.bf16.mxu0 0
    %263 = vmatpush1.bf16.msra.mxu0 %v193
    %264 = vmatprep.subr.bf16.mxu0 0
    %265 = vmatpush1.bf16.msra.mxu0 %v194
    %266 = vmatprep.subr.bf16.mxu0 0
    %267 = vmatpush1.bf16.msra.mxu0 %v195
    %268 = vmatprep.subr.bf16.mxu0 0
    %269 = vmatpush1.bf16.msra.mxu0 %v196
    %270 = vmatprep.subr.bf16.mxu0 0
    %271 = vmatpush1.bf16.msra.mxu0 0
    %272 = vmatprep.subr.bf16.mxu0 0
    %273 = vmatpush1.bf16.msra.mxu0 0
    %274 = vmatprep.subr.bf16.mxu0 0
    %275 = vmatpush1.bf16.msra.mxu0 0
    %276 = vmatprep.subr.bf16.mxu0 0
    %277 = vmatpush1.bf16.msra.mxu0 0
    %278 = vmatprep.subr.bf16.mxu0 0
    %279 = vmatpush1.bf16.msra.mxu0 0
    %280 = vmatprep.subr.bf16.mxu0 0
    %281 = vmatpush1.bf16.msra.mxu0 0
    %282 = vmatprep.subr.bf16.mxu0 0
    %283 = vmatpush1.bf16.msra.mxu0 0
    %284 = vmatprep.subr.bf16.mxu0 0
    %285 = vmatpush1.bf16.msra.mxu0 0
    %286 = vmatprep.subr.bf16.mxu0 0
    %287 = vmatpush1.bf16.msra.mxu0 0
    %288 = vmatprep.subr.bf16.mxu0 0
    %289 = vmatpush1.bf16.msra.mxu0 0
    %290 = vmatprep.subr.bf16.mxu0 0
    %291 = vmatpush1.bf16.msra.mxu0 0
    %292 = vmatprep.subr.bf16.mxu0 0
    %293 = vmatpush1.bf16.msra.mxu0 0
    %294 = vmatprep.mubr.bf16.mxu0 0
    %295 = vmatmul.mubr.bf16.gmra.mrb[0].mxu0 %v239
    %v296 = vpop.f32.mrb[0].mxu0
    %v297 = vadd.f32 0.0, %v296
    %v298 = vpop.f32.mrb[0].mxu0
    %v299 = vpop.f32.mrb[0].mxu0
    %v300 = vadd.f32 0.0, %v299
    %v301 = vpop.f32.mrb[0].mxu0
    %302 = vmatprep.mubr.bf16.mxu0 0
    %303 = vmatmul.mubr.bf16.gmra.mrb[0].mxu0 %v242
    %v304 = vpop.f32.mrb[0].mxu0
    %v305 = vadd.f32 0.0, %v304
    %v306 = vpop.f32.mrb[0].mxu0
    %v307 = vpop.f32.mrb[0].mxu0
    %v308 = vadd.f32 0.0, %v307
    %v309 = vpop.f32.mrb[0].mxu0
    %310 = vmatprep.mubr.bf16.mxu0 0
    %311 = vmatmul.mubr.bf16.gmra.mrb[0].mxu0 %v245
    %v312 = vpop.f32.mrb[0].mxu0
    %v313 = vadd.f32 0.0, %v312
    %v314 = vpop.f32.mrb[0].mxu0
    %v315 = vpop.f32.mrb[0].mxu0
    %v316 = vadd.f32 0.0, %v315
    %v317 = vpop.f32.mrb[0].mxu0
    %318 = vmatprep.mubr.bf16.mxu0 0
    %319 = vmatmul.mubr.bf16.gmra.mrb[0].mxu0 %v248
    %v320 = vpop.f32.mrb[0].mxu0
    %v321 = vadd.f32 0.0, %v320
    %v322 = vpop.f32.mrb[0].mxu0
    %v323 = vpop.f32.mrb[0].mxu0
    %v324 = vadd.f32 0.0, %v323
    %v325 = vpop.f32.mrb[0].mxu0
    %326 = vmatprep.mubr.bf16.mxu0 0
    %327 = vmatmul.mubr.bf16.gmra.mrb[0].mxu0 %v251
    %v328 = vpop.f32.mrb[0].mxu0
    %v329 = vadd.f32 0.0, %v328
    %v330 = vpop.f32.mrb[0].mxu0
    %v331 = vpop.f32.mrb[0].mxu0
    %v332 = vadd.f32 0.0, %v331
    %v333 = vpop.f32.mrb[0].mxu0
    %334 = vmatprep.mubr.bf16.mxu0 0
    %335 = vmatmul.mubr.bf16.gmra.mrb[0].mxu0 %v254
    %v336 = vpop.f32.mrb[0].mxu0
    %v337 = vadd.f32 0.0, %v336
    %v338 = vpop.f32.mrb[0].mxu0
    %v339 = vpop.f32.mrb[0].mxu0
    %v340 = vadd.f32 0.0, %v339
    %v341 = vpop.f32.mrb[0].mxu0
    %342 = vmatprep.mubr.bf16.mxu0 0
    %343 = vmatmul.mubr.bf16.gmra.mrb[0].mxu0 %v257
    %v344 = vpop.f32.mrb[0].mxu0
    %v345 = vadd.f32 0.0, %v344
    %v346 = vpop.f32.mrb[0].mxu0
    %v347 = vpop.f32.mrb[0].mxu0
    %v348 = vadd.f32 0.0, %v347
    %v349 = vpop.f32.mrb[0].mxu0
    %350 = vmatprep.mubr.bf16.mxu0 0
    %351 = vmatmul.mubr.bf16.gmra.mrb[0].mxu0 %v260
    %v352 = vpop.f32.mrb[0].mxu0
    %v353 = vadd.f32 0.0, %v352
    %v354 = vpop.f32.mrb[0].mxu0
    %v355 = vpop.f32.mrb[0].mxu0
    %v356 = vadd.f32 0.0, %v355
    %v357 = vpop.f32.mrb[0].mxu0
    %358 = vdwg.mxu0
    %359 = vst [vmem:[#allocation2] sm:$0xff] %v297
    %360 = vst [vmem:[#allocation2 + $0x8] sm:$0xff] %v300
    %361 = vst [vmem:[#allocation2 + $0x10] sm:$0xff] %v305
    %362 = vst [vmem:[#allocation2 + $0x18] sm:$0xff] %v308
    %363 = vst [vmem:[#allocation2 + $0x20] sm:$0xff] %v313
    %364 = vst [vmem:[#allocation2 + $0x28] sm:$0xff] %v316
    %365 = vst [vmem:[#allocation2 + $0x30] sm:$0xff] %v321
    %366 = vst [vmem:[#allocation2 + $0x38] sm:$0xff] %v324
    %367 = vst [vmem:[#allocation2 + $0x40] sm:$0xff] %v329
    %368 = vst [vmem:[#allocation2 + $0x48] sm:$0xff] %v332
    %369 = vst [vmem:[#allocation2 + $0x50] sm:$0xff] %v337
    %370 = vst [vmem:[#allocation2 + $0x58] sm:$0xff] %v340
    %371 = vst [vmem:[#allocation2 + $0x60] sm:$0xff] %v345
    %372 = vst [vmem:[#allocation2 + $0x68] sm:$0xff] %v348
    %373 = vst [vmem:[#allocation2 + $0x70] sm:$0xff] %v353
    %374 = vst [vmem:[#allocation2 + $0x78] sm:$0xff] %v356
    // Predicated region
    $region14: #{tpu_custom_call.1} parent=1 // pred_check
      _
    $region15: #{tpu_custom_call.1} parent=1 // pred_check_branch
      %376 = sbr.rel (0) target = $region17
    $region16: #{tpu_custom_call.1} parent=1 // pred_region
      %s378 = ssub.s32 2048, 2048
      %379 = vsyncadd [#allocation3], %s378
      %s380 = sshll.u32 [#allocation2], 4
      %s381 = int_to_ptr.vmem [resolvable:$true] %s380
      %386 = dma.vmem_to_hbm [thread:$0]  %s381, 2048, %s3, [#allocation3], 128, 128, 8
    $region17: #{tpu_custom_call.1} parent=1 // pred_fallthru
      _
    // Predicated region
    $region18: #{tpu_custom_call.1} parent=1 // pred_check
      _
    $region19: #{tpu_custom_call.1} parent=1 // pred_check_branch
      %388 = sbr.rel (0) target = $region21
    $region20: #{tpu_custom_call.1} parent=1 // pred_region
      %389 = dma.done [#allocation3], 2048
    $region21: #{tpu_custom_call.1} parent=1 // pred_fallthru
      _
    %390 = vsyncpa [#allocation3], 1

</llo_original>
